<compile_context>
chip_gen: v5e
topology: v5e:2x2
jax: 0.10.0
libtpu: 0.0.40
codegen_flags: <defaults>
</compile_context>

<pallas_src>
import jax
import jax.numpy as jnp
from jax import lax
from jax.experimental import pallas as pl
from jax.experimental.pallas import tpu as pltpu


def _round_up(x, m):
    return ((x + m - 1) // m) * m


def _vmem_cap_bytes():
    """Generation-aware usable-VMEM cap (v7x has only 64 MiB per core)."""
    try:
        cap = int(pltpu.get_tpu_info().vmem_capacity_bytes)
    except Exception:
        cap = 64 << 20                      # conservative fallback (v7x size)
    return max(cap - (8 << 20), 16 << 20)   # leave headroom for compiler use


def _pick_tn(N, E, itemsize):
    """Token tile: target ~2 MiB per x stream buffer, clamp to [512, 2048]."""
    tn = (2 << 20) // max(E * itemsize, 1)
    tn = max(512, min(2048, tn))
    tn = (tn // 128) * 128
    return min(tn, _round_up(N, 128))


def _make_pool_kernel(N, tn, tiles_per_split, num_tiles, needs_clamp):
    ragged = (N % tn) != 0

    def pool_kernel(starts_ref, ends_ref, x_ref, out_ref, acc_ref):
        n = pl.program_id(1)
        P = starts_ref.shape[0]

        @pl.when(n == 0)
        def _init():
            acc_ref[...] = jnp.zeros_like(acc_ref)

        blk = pl.program_id(0) * tiles_per_split + n
        # Block index actually loaded (duplicate steps past the end of x are
        # clamped to the last real block by the BlockSpec index_map).
        x_blk = jnp.minimum(blk, num_tiles - 1) if needs_clamp else blk

        # Segment mask over the *global* rows this grid step owns; duplicate
        # (clamped) blocks get an all-zero mask and contribute nothing.
        row_ids = blk * tn + lax.broadcasted_iota(jnp.int32, (P, tn), 1)
        starts = starts_ref[...]                                     # (P, 1)
        ends = ends_ref[...]                                         # (P, 1)
        mask = jnp.logical_and(row_ids >= starts,
                               row_ids < ends).astype(x_ref.dtype)   # (P, tn)

        def accum(x_block):
            acc_ref[...] += jnp.dot(mask, x_block,
                                    preferred_element_type=jnp.float32)

        if ragged:
            # Rows >= N of the last x block are undefined memory; zero them
            # before the MXU (a zero mask does NOT protect: 0 * NaN = NaN).
            is_tail = x_blk == num_tiles - 1

            @pl.when(is_tail)
            def _tail():
                rows = x_blk * tn + lax.broadcasted_iota(jnp.int32, (tn, 1), 0)
                x_ok = jnp.where(rows < N, x_ref[...], 0).astype(x_ref.dtype)
                accum(x_ok)

            @pl.when(jnp.logical_not(is_tail))
            def _full():
                accum(x_ref[...])
        else:
            accum(x_ref[...])

        @pl.when(n == tiles_per_split - 1)
        def _flush():
            out_ref[0, :, :] = acc_ref[...]

    return pool_kernel


def _cls_epilogue_kernel(starts_ref, ends_ref, part_ref, w1_ref, b1_ref,
                         w2_ref, b2_ref, out_ref):
    # Reduce per-split partial sums, divide by counts, then Linear->ReLU->Linear.
    seg_sum = jnp.sum(part_ref[...], axis=0)                         # (P, E) f32
    counts = jnp.maximum(ends_ref[...] - starts_ref[...], 1)         # (P, 1)
    pooled = (seg_sum / counts.astype(jnp.float32)).astype(w1_ref.dtype)

    h = jnp.dot(pooled, w1_ref[...], preferred_element_type=jnp.float32)
    h = jnp.maximum(h + b1_ref[...].astype(jnp.float32), 0.0)
    h = h.astype(w2_ref.dtype)

    o = jnp.dot(h, w2_ref[...], preferred_element_type=jnp.float32)
    out_ref[...] = (o + b2_ref[...].astype(jnp.float32)).astype(out_ref.dtype)


def cls_head(x, cu_lens, w1, b1, w2, b2, *, tn=None, num_token_splits=2):
    """x: (N, E); cu_lens: (P+1,) int32, sorted, cu_lens[-1] <= N;
    w1: (E, H), b1: (H,), w2: (H, C), b2: (C,) (weights transposed vs torch).
    Returns (P,) bf16 logits for C == 1, else (P, C)."""
    N, E = x.shape
    H = w1.shape[1]
    C = w2.shape[1]
    P = cu_lens.shape[0] - 1
    itemsize = jnp.dtype(x.dtype).itemsize

    tn = _pick_tn(N, E, itemsize) if tn is None else max(128, _round_up(tn, 128))

    num_tiles = pl.cdiv(N, tn)
    splits = max(1, min(num_token_splits, num_tiles))
    tiles_per_split = pl.cdiv(num_tiles, splits)
    splits = pl.cdiv(num_tiles, tiles_per_split)          # trim empty splits
    needs_clamp = splits * tiles_per_split > num_tiles

    starts = cu_lens[:-1].reshape(P, 1).astype(jnp.int32)
    ends = cu_lens[1:].reshape(P, 1).astype(jnp.int32)
    b1_2d = b1.reshape(1, H)
    b2_2d = b2.reshape(1, C)

    cap = _vmem_cap_bytes()
    P_pad = _round_up(P, 8)
    E_pad = _round_up(E, 128)

    # ---------------- kernel 1: streaming partition sums ----------------
    pool_need = (2 * tn * E * itemsize            # double-buffered x stream
                 + 3 * P_pad * E_pad * 4          # acc scratch + out buffers
                 + 4 * 8 * 128 * 4)               # starts / ends (padded)
    pool_vmem = int(min(max(2 * pool_need + (2 << 20), 16 << 20), cap))

    pool_cost = pl.CostEstimate(
        flops=2 * P * num_tiles * tn * E,
        transcendentals=0,
        bytes_accessed=N * E * itemsize + splits * P * E * 4 + 2 * P * 4,
    )

    if needs_clamp:
        x_index_map = lambda s, n: (
            jnp.minimum(s * tiles_per_split + n, num_tiles - 1), 0)
    else:
        x_index_map = lambda s, n: (s * tiles_per_split + n, 0)

    partials = pl.pallas_call(
        _make_pool_kernel(N, tn, tiles_per_split, num_tiles, needs_clamp),
        out_shape=jax.ShapeDtypeStruct((splits, P, E), jnp.float32),
        grid_spec=pltpu.PrefetchScalarGridSpec(
            num_scalar_prefetch=0,
            grid=(splits, tiles_per_split),
            in_specs=[
                pl.BlockSpec((P, 1), lambda s, n: (0, 0)),    # starts (resident)
                pl.BlockSpec((P, 1), lambda s, n: (0, 0)),    # ends   (resident)
                pl.BlockSpec((tn, E), x_index_map),           # x      (streamed)
            ],
            out_specs=pl.BlockSpec((1, P, E), lambda s, n: (s, 0, 0)),
            scratch_shapes=[pltpu.VMEM((P, E), jnp.float32)],
        ),
        compiler_params=pltpu.CompilerParams(
            dimension_semantics=("parallel", "arbitrary"),
            vmem_limit_bytes=pool_vmem,
        ),
        cost_estimate=pool_cost,
    )(starts, ends, x)

    # ---------------- kernel 2: reduce + mean + 2-layer FFN ----------------
    wsize = jnp.dtype(w1.dtype).itemsize
    H_pad = _round_up(H, 128)
    C_pad = _round_up(C, 128)
    epi_need = (splits * P_pad * E_pad * 4
                + E_pad * H_pad * wsize + 8 * H_pad * wsize
                + H_pad * C_pad * wsize + 8 * C_pad * wsize
                + P_pad * C_pad * 4 + 4 * 8 * 128 * 4
                + P_pad * max(E_pad, H_pad) * 4)          # intermediates
    epi_vmem = int(min(max(2 * epi_need + (2 << 20), 16 << 20), cap))

    epi_cost = pl.CostEstimate(
        flops=2 * P * E * H + 2 * P * H * C,
        transcendentals=0,
        bytes_accessed=(splits * P * E * 4 + E * H * wsize + H * C * wsize
                        + (H + C + P * C) * wsize + 2 * P * 4),
    )

    out = pl.pallas_call(
        _cls_epilogue_kernel,
        out_shape=jax.ShapeDtypeStruct((P, C), jnp.bfloat16),
        compiler_params=pltpu.CompilerParams(vmem_limit_bytes=epi_vmem),
        cost_estimate=epi_cost,
    )(starts, ends, partials, w1, b1_2d, w2, b2_2d)

    return out.squeeze(-1) if C == 1 else out   # matches torch .squeeze(-1)


def _reference(x, cu_lens, w1, b1, w2, b2):
    P = cu_lens.shape[0] - 1
    pooled = []
    for i in range(P):
        s, e = int(cu_lens[i]), int(cu_lens[i + 1])
        pooled.append(jnp.mean(x[s:e].astype(jnp.float32), axis=0))
    pooled = jnp.stack(pooled).astype(jnp.bfloat16)
    h = jnp.maximum(
        jnp.dot(pooled, w1, preferred_element_type=jnp.float32)
        + b1.astype(jnp.float32), 0.0).astype(jnp.bfloat16)
    o = jnp.dot(h, w2, preferred_element_type=jnp.float32) + b2.astype(jnp.float32)
    return o.astype(jnp.bfloat16).squeeze(-1)


if __name__ == "__main__":
    key = jax.random.PRNGKey(0)
    kx1, kx2, k1, kb1, k2, kb2 = jax.random.split(key, 6)

    E, H, C = 128, 256, 1   # small shapes consistent with the module

    # nn.Linear default init: U(-1/sqrt(fan_in), 1/sqrt(fan_in)), bf16 params.
    lim1 = 1.0 / (E ** 0.5)
    w1 = jax.random.uniform(k1, (E, H), minval=-lim1, maxval=lim1,
                            dtype=jnp.float32).astype(jnp.bfloat16)
    b1 = jax.random.uniform(kb1, (H,), minval=-lim1, maxval=lim1,
                            dtype=jnp.float32).astype(jnp.bfloat16)
    lim2 = 1.0 / (H ** 0.5)
    w2 = jax.random.uniform(k2, (H, C), minval=-lim2, maxval=lim2,
                            dtype=jnp.float32).astype(jnp.bfloat16)
    b2 = jax.random.uniform(kb2, (C,), minval=-lim2, maxval=lim2,
                            dtype=jnp.float32).astype(jnp.bfloat16)

    # Case 1: N divides the auto-picked tile -> single grid step, no pad/copy.
    N1 = 2048
    x1 = jax.random.normal(kx1, (N1, E), dtype=jnp.float32).astype(jnp.bfloat16)
    cu1 = jnp.array([0, 100, 350, 351, 1500, 2048], dtype=jnp.int32)
    out1 = cls_head(x1, cu1, w1, b1, w2, b2)
    jax.block_until_ready(out1)
    ref1 = _reference(x1, cu1, w1, b1, w2, b2)
    assert out1.shape == ref1.shape == (cu1.shape[0] - 1,)
    assert jnp.allclose(out1.astype(jnp.float32), ref1.astype(jnp.float32),
                        atol=2e-2, rtol=2e-2), (out1, ref1)

    # Case 2: ragged tail (N % tn != 0) + uneven 2-way token split
    # (exercises in-kernel tail zeroing and the clamped duplicate block).
    N2 = 1500
    x2 = jax.random.normal(kx2, (N2, E), dtype=jnp.float32).astype(jnp.bfloat16)
    cu2 = jnp.array([0, 7, 300, 1100, 1500], dtype=jnp.int32)
    out2 = cls_head(x2, cu2, w1, b1, w2, b2, tn=512, num_token_splits=2)
    jax.block_until_ready(out2)
    ref2 = _reference(x2, cu2, w1, b1, w2, b2)
    assert out2.shape == ref2.shape == (cu2.shape[0] - 1,)
    assert jnp.allclose(out2.astype(jnp.float32), ref2.astype(jnp.float32),
                        atol=2e-2, rtol=2e-2), (out2, ref2)

    print("KERNEL_OK")
</pallas_src>

<mosaic_0001>
module attributes {stable_mosaic.version = 11 : i64} {
  func.func @pool_kernel(%arg0: i32, %arg1: i32, %arg2: memref<5x1xi32, #tpu.memory_space<vmem>>, %arg3: memref<5x1xi32, #tpu.memory_space<vmem>>, %arg4: memref<2048x128xbf16, #tpu.memory_space<vmem>>, %arg5: memref<1x5x128xf32, #tpu.memory_space<vmem>>, %arg6: memref<5x128xf32, #tpu.memory_space<vmem>>) attributes {dimension_semantics = [#tpu.dimension_semantics<parallel>, #tpu.dimension_semantics<arbitrary>], iteration_bounds = array<i64: 1, 1>, scalar_prefetch = 0 : i64, scratch_operands = 1 : i64, tpu.core_type = #tpu.core_type<tc>, window_params = [{pipeline_mode = #tpu.pipeline_mode<synchronous>, transform_indices = @transform_0, window_bounds = array<i64: 5, 1>}, {pipeline_mode = #tpu.pipeline_mode<synchronous>, transform_indices = @transform_1, window_bounds = array<i64: 5, 1>}, {transform_indices = @transform_2, window_bounds = array<i64: 2048, 128>}, {transform_indices = @transform_3, window_bounds = array<i64: 1, 5, 128>}]} {
    %c0_i32 = arith.constant 0 : i32
    %0 = arith.cmpi eq, %arg1, %c0_i32 : i32
    %1 = arith.extui %0 : i1 to i32
    %c0_i32_0 = arith.constant 0 : i32
    %2 = arith.cmpi ne, %1, %c0_i32_0 : i32
    scf.if %2 {
      %cst_12 = arith.constant 0.000000e+00 : f32
      %27 = vector.broadcast %cst_12 : f32 to vector<5x128xf32>
      %c0_13 = arith.constant 0 : index
      %c0_14 = arith.constant 0 : index
      %28 = vector.load %arg6[%c0_13, %c0_14] : memref<5x128xf32, #tpu.memory_space<vmem>>, vector<5x128xf32>
      tpu.vector_store %arg6[%c0_13, %c0_14], %27 {strides = array<i32>} : memref<5x128xf32, #tpu.memory_space<vmem>>, vector<5x128xf32>,
    } else {
    }
    %c1_i32 = arith.constant 1 : i32
    %3 = arith.muli %arg0, %c1_i32 : i32
    %4 = arith.addi %3, %arg1 : i32
    %c2048_i32 = arith.constant 2048 : i32
    %5 = arith.muli %4, %c2048_i32 : i32
    %6 = tpu.iota {dimensions = array<i32: 1>} : vector<5x2048xi32>
    %7 = vector.broadcast %5 : i32 to vector<5x2048xi32>
    %8 = arith.addi %7, %6 : vector<5x2048xi32>
    %c0 = arith.constant 0 : index
    %c0_1 = arith.constant 0 : index
    %9 = vector.load %arg2[%c0, %c0_1] : memref<5x1xi32, #tpu.memory_space<vmem>>, vector<5x1xi32>
    %c0_2 = arith.constant 0 : index
    %c0_3 = arith.constant 0 : index
    %10 = vector.load %arg3[%c0_2, %c0_3] : memref<5x1xi32, #tpu.memory_space<vmem>>, vector<5x1xi32>
    %11 = vector.broadcast %9 : vector<5x1xi32> to vector<5x2048xi32>
    %12 = arith.cmpi sge, %8, %11 : vector<5x2048xi32>
    %13 = vector.broadcast %10 : vector<5x1xi32> to vector<5x2048xi32>
    %14 = arith.cmpi slt, %8, %13 : vector<5x2048xi32>
    %15 = arith.andi %12, %14 : vector<5x2048xi1>
    %16 = arith.extui %15 : vector<5x2048xi1> to vector<5x2048xi32>
    %17 = arith.sitofp %16 : vector<5x2048xi32> to vector<5x2048xf32>
    %18 = arith.truncf %17 : vector<5x2048xf32> to vector<5x2048xbf16>
    %c0_4 = arith.constant 0 : index
    %c0_5 = arith.constant 0 : index
    %19 = vector.load %arg4[%c0_4, %c0_5] : memref<2048x128xbf16, #tpu.memory_space<vmem>>, vector<2048x128xbf16>
    %c0_6 = arith.constant 0 : index
    %c0_7 = arith.constant 0 : index
    %20 = vector.load %arg6[%c0_6, %c0_7] : memref<5x128xf32, #tpu.memory_space<vmem>>, vector<5x128xf32>
    %cst = arith.constant dense<0.000000e+00> : vector<5x128xf32>
    %21 = tpu.matmul %18, %19, %cst {dimension_numbers = #tpu.dot_dimension_numbers<[1], [0], [0], [1], [0, 0, 1, 1], [], []>} : vector<5x2048xbf16>, vector<2048x128xbf16>, vector<5x128xf32> -> vector<5x128xf32>
    %22 = arith.addf %20, %21 : vector<5x128xf32>
    %c0_8 = arith.constant 0 : index
    %c0_9 = arith.constant 0 : index
    %23 = vector.load %arg6[%c0_8, %c0_9] : memref<5x128xf32, #tpu.memory_space<vmem>>, vector<5x128xf32>
    tpu.vector_store %arg6[%c0_8, %c0_9], %22 {strides = array<i32>} : memref<5x128xf32, #tpu.memory_space<vmem>>, vector<5x128xf32>,
    %c0_i32_10 = arith.constant 0 : i32
    %24 = arith.cmpi eq, %arg1, %c0_i32_10 : i32
    %25 = arith.extui %24 : i1 to i32
    %c0_i32_11 = arith.constant 0 : i32
    %26 = arith.cmpi ne, %25, %c0_i32_11 : i32
    scf.if %26 {
      %c0_12 = arith.constant 0 : index
      %c0_13 = arith.constant 0 : index
      %27 = vector.load %arg6[%c0_12, %c0_13] : memref<5x128xf32, #tpu.memory_space<vmem>>, vector<5x128xf32>
      %c0_14 = arith.constant 0 : index
      %c0_15 = arith.constant 0 : index
      %c0_16 = arith.constant 0 : index
      %28 = vector.load %arg5[%c0_14, %c0_15, %c0_16] : memref<1x5x128xf32, #tpu.memory_space<vmem>>, vector<1x5x128xf32>
      %29 = vector.shape_cast %28 : vector<1x5x128xf32> to vector<5x128xf32>
      %30 = vector.shape_cast %27 : vector<5x128xf32> to vector<1x5x128xf32>
      tpu.vector_store %arg5[%c0_14, %c0_15, %c0_16], %30 {strides = array<i32>} : memref<1x5x128xf32, #tpu.memory_space<vmem>>, vector<1x5x128xf32>,
    } else {
    }
    return
  }
  func.func @transform_0(%arg0: i32, %arg1: i32) -> (i32, i32) {
    %c0_i32 = arith.constant 0 : i32
    %c0_i32_0 = arith.constant 0 : i32
    %c0_i32_1 = arith.constant 0 : i32
    return %c0_i32, %c0_i32_0 : i32, i32
  }
  func.func @transform_1(%arg0: i32, %arg1: i32) -> (i32, i32) {
    %c0_i32 = arith.constant 0 : i32
    %c0_i32_0 = arith.constant 0 : i32
    %c0_i32_1 = arith.constant 0 : i32
    return %c0_i32, %c0_i32_0 : i32, i32
  }
  func.func @transform_2(%arg0: i32, %arg1: i32) -> (i32, i32) {
    %c1_i32 = arith.constant 1 : i32
    %0 = arith.muli %arg0, %c1_i32 : i32
    %1 = arith.addi %0, %arg1 : i32
    %c0_i32 = arith.constant 0 : i32
    %c0_i32_0 = arith.constant 0 : i32
    return %1, %c0_i32 : i32, i32
  }
  func.func @transform_3(%arg0: i32, %arg1: i32) -> (i32, i32, i32) {
    %c0_i32 = arith.constant 0 : i32
    %c0_i32_0 = arith.constant 0 : i32
    %c0_i32_1 = arith.constant 0 : i32
    return %arg0, %c0_i32, %c0_i32_0 : i32, i32, i32
  }
}

</mosaic_0001>

<llo_original>
// kernel: tpu_custom_call.1
$region0: #{tpu_custom_call.1}
  #allocation0 [shape = 'u32[]', space=smem, size = 0x4, offset = 0x4, fixed_abs, tag = 'smem constant byte address 0x4 - core index']
  #allocation1 [shape = 'u32[72,128]{1,0:T(1,128)}', space=vmem, size = 0x9000, scoped, tag = 'internal scratch']
  #allocation2 [shape = 'f32[5,128]{1,0:T(8,128)}', space=vmem, size = 0x1000, scoped, tag = 'scratch operand']
  %s0 = inlined_call_operand.vmem [shape: s32[5,1], index: 0, kind: input, shape index: {}]
  %s1 = inlined_call_operand.vmem [shape: s32[5,1], index: 1, kind: input, shape index: {}]
  %s2 = inlined_call_operand.hbm [shape: bf16[2048,128], index: 2, kind: input, shape index: {}]
  %s3 = inlined_call_operand.vmem [shape: f32[1,5,128], index: 3, kind: output, shape index: {}]
  %s4 = sld [smem:[#allocation0]]
  $region34: #{tpu_custom_call.1} parent=0
    _
  %s6 = ssub.s32 1, %s4
  %s7 = scalar_select 0, %s6, %s4
  $region1: #{tpu_custom_call.1} parent=0
    #allocation3 [shape = 'u8[524288]{0}', space=vmem, size = 0x80000, scoped, tag = 'input window, operand 2, single buffered']
    #allocation4 [shape = 's32[1]{0}', space=sflag, size = 0x4, scoped, tag = 'scoped memory for tpu_custom_call.1']
    %8 = vsyncpa [#allocation4], 0
    // Predicated region
    $region2: #{tpu_custom_call.1} parent=1 // pred_check
      _
    $region3: #{tpu_custom_call.1} parent=1 // pred_check_branch
      %10 = sbr.rel (0) target = $region5
    $region4: #{tpu_custom_call.1} parent=1 // pred_region
      _
    $region5: #{tpu_custom_call.1} parent=1 // pred_fallthru
      _
    // Predicated region
    $region6: #{tpu_custom_call.1} parent=1 // pred_check
      _
    $region7: #{tpu_custom_call.1} parent=1 // pred_check_branch
      %12 = sbr.rel (0) target = $region9
    $region8: #{tpu_custom_call.1} parent=1 // pred_region
      _
    $region9: #{tpu_custom_call.1} parent=1 // pred_fallthru
      _
    // Predicated region
    $region10: #{tpu_custom_call.1} parent=1 // pred_check
      _
    $region11: #{tpu_custom_call.1} parent=1 // pred_check_branch
      %14 = sbr.rel (0) target = $region13
    $region12: #{tpu_custom_call.1} parent=1 // pred_region
      %s15 = sadd.s32 0, 0
      %s16 = smul.u32 256, %s15
      %18 = vsyncadd [#allocation4], 0
      %s19 = smul.addr %s16, 4
      %s20 = scalar_lea.hbm %s2, %s19
      %s21 = sshll.u32 %s20, 4
      %s22 = int_to_ptr.hbm [resolvable:$true] %s21
      %s23 = sshll.u32 [#allocation3], 4
      %s24 = int_to_ptr.vmem [resolvable:$true] %s23
      %29 = dma.hbm_to_vmem [thread:$0]  %s22, 16384, %s24, [#allocation4], 64, 64, 4
    $region13: #{tpu_custom_call.1} parent=1 // pred_fallthru
      _
    // Predicated region
    $region14: #{tpu_custom_call.1} parent=1 // pred_check
      _
    $region15: #{tpu_custom_call.1} parent=1 // pred_check_branch
      %31 = sbr.rel (0) target = $region17
    $region16: #{tpu_custom_call.1} parent=1 // pred_region
      %33 = dma.done [#allocation4], 16384
    $region17: #{tpu_custom_call.1} parent=1 // pred_fallthru
      _
    %s34 = sadd.s32 0, 0
    %s35 = smul.u32 256, %s34
    %p36 = scmp.eq.s32.totalorder 0, 0
    // Predicated region
    $region18: #{tpu_custom_call.1} parent=1 // pred_check
      %p37 = pneg %p36
    $region19: #{tpu_custom_call.1} parent=1 // pred_check_branch
      %39 = sbr.rel (%p37) target = $region21
    $region20: #{tpu_custom_call.1} parent=1 // pred_region
      %40 = vst [vmem:[#allocation2] sm:$0x1f] 0.0
    $region21: #{tpu_custom_call.1} parent=1 // pred_fallthru
      _
    %s41 = sadd.s32 0, 0
    %s42 = smul.u32 %s41, 2048
    %v43 = vlaneseq
    %v44 = vand.u32 %v43, 127
    %v45 = vadd.s32 %v44, 128
    %v46 = vadd.s32 %v44, 256
    %v47 = vadd.s32 %v44, 384
    %v48 = vadd.s32 %v44, 512
    %v49 = vadd.s32 %v44, 640
    %v50 = vadd.s32 %v44, 768
    %v51 = vadd.s32 %v44, 896
    %v52 = vadd.s32 %v44, 1024
    %v53 = vadd.s32 %v44, 1152
    %v54 = vadd.s32 %v44, 1280
    %v55 = vadd.s32 %v44, 1408
    %v56 = vadd.s32 %v44, 1536
    %v57 = vadd.s32 %v44, 1664
    %v58 = vadd.s32 %v44, 1792
    %v59 = vadd.s32 %v44, 1920
    %v60 = vstv %s42
    %v61 = vadd.s32 %v60, %v44
    %v62 = vadd.s32 %v60, %v45
    %v63 = vadd.s32 %v60, %v46
    %v64 = vadd.s32 %v60, %v47
    %v65 = vadd.s32 %v60, %v48
    %v66 = vadd.s32 %v60, %v49
    %v67 = vadd.s32 %v60, %v50
    %v68 = vadd.s32 %v60, %v51
    %v69 = vadd.s32 %v60, %v52
    %v70 = vadd.s32 %v60, %v53
    %v71 = vadd.s32 %v60, %v54
    %v72 = vadd.s32 %v60, %v55
    %v73 = vadd.s32 %v60, %v56
    %v74 = vadd.s32 %v60, %v57
    %v75 = vadd.s32 %v60, %v58
    %v76 = vadd.s32 %v60, %v59
    %v77 = vld [vmem:[%s0] sm:$0x1f]
    %v78 = vld [vmem:[%s1] sm:$0x1f]
    %79 = vset.pattern.permute.xlu0 0
    %80 = vperm.xlu0 %79, %v77
    %v81 = vpop.permute.xlu0 %80
    %vm82 = vcmp.ge.s32.totalorder %v61, %v81
    %vm83 = vcmp.ge.s32.totalorder %v62, %v81
    %vm84 = vcmp.ge.s32.totalorder %v63, %v81
    %vm85 = vcmp.ge.s32.totalorder %v64, %v81
    %vm86 = vcmp.ge.s32.totalorder %v65, %v81
    %vm87 = vcmp.ge.s32.totalorder %v66, %v81
    %vm88 = vcmp.ge.s32.totalorder %v67, %v81
    %vm89 = vcmp.ge.s32.totalorder %v68, %v81
    %vm90 = vcmp.ge.s32.totalorder %v69, %v81
    %vm91 = vcmp.ge.s32.totalorder %v70, %v81
    %vm92 = vcmp.ge.s32.totalorder %v71, %v81
    %vm93 = vcmp.ge.s32.totalorder %v72, %v81
    %vm94 = vcmp.ge.s32.totalorder %v73, %v81
    %vm95 = vcmp.ge.s32.totalorder %v74, %v81
    %vm96 = vcmp.ge.s32.totalorder %v75, %v81
    %vm97 = vcmp.ge.s32.totalorder %v76, %v81
    %98 = vset.pattern.permute.xlu0 0
    %99 = vperm.xlu0 %98, %v78
    %v100 = vpop.permute.xlu0 %99
    %vm101 = vcmp.lt.s32.totalorder %v61, %v100
    %vm102 = vcmp.lt.s32.totalorder %v62, %v100
    %vm103 = vcmp.lt.s32.totalorder %v63, %v100
    %vm104 = vcmp.lt.s32.totalorder %v64, %v100
    %vm105 = vcmp.lt.s32.totalorder %v65, %v100
    %vm106 = vcmp.lt.s32.totalorder %v66, %v100
    %vm107 = vcmp.lt.s32.totalorder %v67, %v100
    %vm108 = vcmp.lt.s32.totalorder %v68, %v100
    %vm109 = vcmp.lt.s32.totalorder %v69, %v100
    %vm110 = vcmp.lt.s32.totalorder %v70, %v100
    %vm111 = vcmp.lt.s32.totalorder %v71, %v100
    %vm112 = vcmp.lt.s32.totalorder %v72, %v100
    %vm113 = vcmp.lt.s32.totalorder %v73, %v100
    %vm114 = vcmp.lt.s32.totalorder %v74, %v100
    %vm115 = vcmp.lt.s32.totalorder %v75, %v100
    %vm116 = vcmp.lt.s32.totalorder %v76, %v100
    %vm117 = vmand %vm82, %vm101
    %vm118 = vmand %vm83, %vm102
    %vm119 = vmand %vm84, %vm103
    %vm120 = vmand %vm85, %vm104
    %vm121 = vmand %vm86, %vm105
    %vm122 = vmand %vm87, %vm106
    %vm123 = vmand %vm88, %vm107
    %vm124 = vmand %vm89, %vm108
    %vm125 = vmand %vm90, %vm109
    %vm126 = vmand %vm91, %vm110
    %vm127 = vmand %vm92, %vm111
    %vm128 = vmand %vm93, %vm112
    %vm129 = vmand %vm94, %vm113
    %vm130 = vmand %vm95, %vm114
    %vm131 = vmand %vm96, %vm115
    %vm132 = vmand %vm97, %vm116
    %v133 = vsel %vm117, 1, 0
    %v134 = vsel %vm118, 1, 0
    %v135 = vsel %vm119, 1, 0
    %v136 = vsel %vm120, 1, 0
    %v137 = vsel %vm121, 1, 0
    %v138 = vsel %vm122, 1, 0
    %v139 = vsel %vm123, 1, 0
    %v140 = vsel %vm124, 1, 0
    %v141 = vsel %vm125, 1, 0
    %v142 = vsel %vm126, 1, 0
    %v143 = vsel %vm127, 1, 0
    %v144 = vsel %vm128, 1, 0
    %v145 = vsel %vm129, 1, 0
    %v146 = vsel %vm130, 1, 0
    %v147 = vsel %vm131, 1, 0
    %v148 = vsel %vm132, 1, 0
    %v149 = vcvt.s32.f32 %v133
    %v150 = vcvt.s32.f32 %v134
    %v151 = vcvt.s32.f32 %v135
    %v152 = vcvt.s32.f32 %v136
    %v153 = vcvt.s32.f32 %v137
    %v154 = vcvt.s32.f32 %v138
    %v155 = vcvt.s32.f32 %v139
    %v156 = vcvt.s32.f32 %v140
    %v157 = vcvt.s32.f32 %v141
    %v158 = vcvt.s32.f32 %v142
    %v159 = vcvt.s32.f32 %v143
    %v160 = vcvt.s32.f32 %v144
    %v161 = vcvt.s32.f32 %v145
    %v162 = vcvt.s32.f32 %v146
    %v163 = vcvt.s32.f32 %v147
    %v164 = vcvt.s32.f32 %v148
    %v165 = vpack.c.bf16 %v149, %v149
    %v166 = vpack.c.bf16 %v150, %v150
    %v167 = vpack.c.bf16 %v151, %v151
    %v168 = vpack.c.bf16 %v152, %v152
    %v169 = vpack.c.bf16 %v153, %v153
    %v170 = vpack.c.bf16 %v154, %v154
    %v171 = vpack.c.bf16 %v155, %v155
    %v172 = vpack.c.bf16 %v156, %v156
    %v173 = vpack.c.bf16 %v157, %v157
    %v174 = vpack.c.bf16 %v158, %v158
    %v175 = vpack.c.bf16 %v159, %v159
    %v176 = vpack.c.bf16 %v160, %v160
    %v177 = vpack.c.bf16 %v161, %v161
    %v178 = vpack.c.bf16 %v162, %v162
    %v179 = vpack.c.bf16 %v163, %v163
    %v180 = vpack.c.bf16 %v164, %v164
    %v181 = vld [vmem:[#allocation3] sm:$0xf]
    %v182 = vld [vmem:[#allocation3 + $0x4] sm:$0xf]
    %v183 = vld [vmem:[#allocation3 + $0x8] sm:$0xf]
    %v184 = vld [vmem:[#allocation3 + $0xc] sm:$0xf]
    %v185 = vld [vmem:[#allocation3 + $0x10] sm:$0xf]
    %v186 = vld [vmem:[#allocation3 + $0x14] sm:$0xf]
    %v187 = vld [vmem:[#allocation3 + $0x18] sm:$0xf]
    %v188 = vld [vmem:[#allocation3 + $0x1c] sm:$0xf]
    %v189 = vld [vmem:[#allocation3 + $0x20] sm:$0xf]
    %v190 = vld [vmem:[#allocation3 + $0x24] sm:$0xf]
    %v191 = vld [vmem:[#allocation3 + $0x28] sm:$0xf]
    %v192 = vld [vmem:[#allocation3 + $0x2c] sm:$0xf]
    %v193 = vld [vmem:[#allocation3 + $0x30] sm:$0xf]
    %v194 = vld [vmem:[#allocation3 + $0x34] sm:$0xf]
    %v195 = vld [vmem:[#allocation3 + $0x38] sm:$0xf]
    %v196 = vld [vmem:[#allocation3 + $0x3c] sm:$0xf]
    %v197 = vld [vmem:[#allocation3 + $0x40] sm:$0xf]
    %v198 = vld [vmem:[#allocation3 + $0x44] sm:$0xf]
    %v199 = vld [vmem:[#allocation3 + $0x48] sm:$0xf]
    %v200 = vld [vmem:[#allocation3 + $0x4c] sm:$0xf]
    %v201 = vld [vmem:[#allocation3 + $0x50] sm:$0xf]
    %v202 = vld [vmem:[#allocation3 + $0x54] sm:$0xf]
    %v203 = vld [vmem:[#allocation3 + $0x58] sm:$0xf]
    %v204 = vld [vmem:[#allocation3 + $0x5c] sm:$0xf]
    %v205 = vld [vmem:[#allocation3 + $0x60] sm:$0xf]
    %v206 = vld [vmem:[#allocation3 + $0x64] sm:$0xf]
    %v207 = vld [vmem:[#allocation3 + $0x68] sm:$0xf]
    %v208 = vld [vmem:[#allocation3 + $0x6c] sm:$0xf]
    %v209 = vld [vmem:[#allocation3 + $0x70] sm:$0xf]
    %v210 = vld [vmem:[#allocation3 + $0x74] sm:$0xf]
    %v211 = vld [vmem:[#allocation3 + $0x78] sm:$0xf]
    %v212 = vld [vmem:[#allocation3 + $0x7c] sm:$0xf]
    %v213 = vld [vmem:[#allocation3 + $0x80] sm:$0xf]
    %v214 = vld [vmem:[#allocation3 + $0x84] sm:$0xf]
    %v215 = vld [vmem:[#allocation3 + $0x88] sm:$0xf]
    %v216 = vld [vmem:[#allocation3 + $0x8c] sm:$0xf]
    %v217 = vld [vmem:[#allocation3 + $0x90] sm:$0xf]
    %v218 = vld [vmem:[#allocation3 + $0x94] sm:$0xf]
    %v219 = vld [vmem:[#allocation3 + $0x98] sm:$0xf]
    %v220 = vld [vmem:[#allocation3 + $0x9c] sm:$0xf]
    %v221 = vld [vmem:[#allocation3 + $0xa0] sm:$0xf]
    %v222 = vld [vmem:[#allocation3 + $0xa4] sm:$0xf]
    %v223 = vld [vmem:[#allocation3 + $0xa8] sm:$0xf]
    %v224 = vld [vmem:[#allocation3 + $0xac] sm:$0xf]
    %v225 = vld [vmem:[#allocation3 + $0xb0] sm:$0xf]
    %v226 = vld [vmem:[#allocation3 + $0xb4] sm:$0xf]
    %v227 = vld [vmem:[#allocation3 + $0xb8] sm:$0xf]
    %v228 = vld [vmem:[#allocation3 + $0xbc] sm:$0xf]
    %v229 = vld [vmem:[#allocation3 + $0xc0] sm:$0xf]
    %v230 = vld [vmem:[#allocation3 + $0xc4] sm:$0xf]
    %v231 = vld [vmem:[#allocation3 + $0xc8] sm:$0xf]
    %v232 = vld [vmem:[#allocation3 + $0xcc] sm:$0xf]
    %v233 = vld [vmem:[#allocation3 + $0xd0] sm:$0xf]
    %v234 = vld [vmem:[#allocation3 + $0xd4] sm:$0xf]
    %v235 = vld [vmem:[#allocation3 + $0xd8] sm:$0xf]
    %v236 = vld [vmem:[#allocation3 + $0xdc] sm:$0xf]
    %v237 = vld [vmem:[#allocation3 + $0xe0] sm:$0xf]
    %v238 = vld [vmem:[#allocation3 + $0xe4] sm:$0xf]
    %v239 = vld [vmem:[#allocation3 + $0xe8] sm:$0xf]
    %v240 = vld [vmem:[#allocation3 + $0xec] sm:$0xf]
    %v241 = vld [vmem:[#allocation3 + $0xf0] sm:$0xf]
    %v242 = vld [vmem:[#allocation3 + $0xf4] sm:$0xf]
    %v243 = vld [vmem:[#allocation3 + $0xf8] sm:$0xf]
    %v244 = vld [vmem:[#allocation3 + $0xfc] sm:$0xf]
    %v245 = vld [vmem:[#allocation3 + $0x100] sm:$0xf]
    %v246 = vld [vmem:[#allocation3 + $0x104] sm:$0xf]
    %v247 = vld [vmem:[#allocation3 + $0x108] sm:$0xf]
    %v248 = vld [vmem:[#allocation3 + $0x10c] sm:$0xf]
    %v249 = vld [vmem:[#allocation3 + $0x110] sm:$0xf]
    %v250 = vld [vmem:[#allocation3 + $0x114] sm:$0xf]
    %v251 = vld [vmem:[#allocation3 + $0x118] sm:$0xf]
    %v252 = vld [vmem:[#allocation3 + $0x11c] sm:$0xf]
    %v253 = vld [vmem:[#allocation3 + $0x120] sm:$0xf]
    %v254 = vld [vmem:[#allocation3 + $0x124] sm:$0xf]
    %v255 = vld [vmem:[#allocation3 + $0x128] sm:$0xf]
    %v256 = vld [vmem:[#allocation3 + $0x12c] sm:$0xf]
    %v257 = vld [vmem:[#allocation3 + $0x130] sm:$0xf]
    %v258 = vld [vmem:[#allocation3 + $0x134] sm:$0xf]
    %v259 = vld [vmem:[#allocation3 + $0x138] sm:$0xf]
    %v260 = vld [vmem:[#allocation3 + $0x13c] sm:$0xf]
    %v261 = vld [vmem:[#allocation3 + $0x140] sm:$0xf]
    %v262 = vld [vmem:[#allocation3 + $0x144] sm:$0xf]
    %v263 = vld [vmem:[#allocation3 + $0x148] sm:$0xf]
    %v264 = vld [vmem:[#allocation3 + $0x14c] sm:$0xf]
    %v265 = vld [vmem:[#allocation3 + $0x150] sm:$0xf]
    %v266 = vld [vmem:[#allocation3 + $0x154] sm:$0xf]
    %v267 = vld [vmem:[#allocation3 + $0x158] sm:$0xf]
    %v268 = vld [vmem:[#allocation3 + $0x15c] sm:$0xf]
    %v269 = vld [vmem:[#allocation3 + $0x160] sm:$0xf]
    %v270 = vld [vmem:[#allocation3 + $0x164] sm:$0xf]
    %v271 = vld [vmem:[#allocation3 + $0x168] sm:$0xf]
    %v272 = vld [vmem:[#allocation3 + $0x16c] sm:$0xf]
    %v273 = vld [vmem:[#allocation3 + $0x170] sm:$0xf]
    %v274 = vld [vmem:[#allocation3 + $0x174] sm:$0xf]
    %v275 = vld [vmem:[#allocation3 + $0x178] sm:$0xf]
    %v276 = vld [vmem:[#allocation3 + $0x17c] sm:$0xf]
    %v277 = vld [vmem:[#allocation3 + $0x180] sm:$0xf]
    %v278 = vld [vmem:[#allocation3 + $0x184] sm:$0xf]
    %v279 = vld [vmem:[#allocation3 + $0x188] sm:$0xf]
    %v280 = vld [vmem:[#allocation3 + $0x18c] sm:$0xf]
    %v281 = vld [vmem:[#allocation3 + $0x190] sm:$0xf]
    %v282 = vld [vmem:[#allocation3 + $0x194] sm:$0xf]
    %v283 = vld [vmem:[#allocation3 + $0x198] sm:$0xf]
    %v284 = vld [vmem:[#allocation3 + $0x19c] sm:$0xf]
    %v285 = vld [vmem:[#allocation3 + $0x1a0] sm:$0xf]
    %v286 = vld [vmem:[#allocation3 + $0x1a4] sm:$0xf]
    %v287 = vld [vmem:[#allocation3 + $0x1a8] sm:$0xf]
    %v288 = vld [vmem:[#allocation3 + $0x1ac] sm:$0xf]
    %v289 = vld [vmem:[#allocation3 + $0x1b0] sm:$0xf]
    %v290 = vld [vmem:[#allocation3 + $0x1b4] sm:$0xf]
    %v291 = vld [vmem:[#allocation3 + $0x1b8] sm:$0xf]
    %v292 = vld [vmem:[#allocation3 + $0x1bc] sm:$0xf]
    %v293 = vld [vmem:[#allocation3 + $0x1c0] sm:$0xf]
    %v294 = vld [vmem:[#allocation3 + $0x1c4] sm:$0xf]
    %v295 = vld [vmem:[#allocation3 + $0x1c8] sm:$0xf]
    %v296 = vld [vmem:[#allocation3 + $0x1cc] sm:$0xf]
    %v297 = vld [vmem:[#allocation3 + $0x1d0] sm:$0xf]
    %v298 = vld [vmem:[#allocation3 + $0x1d4] sm:$0xf]
    %v299 = vld [vmem:[#allocation3 + $0x1d8] sm:$0xf]
    %v300 = vld [vmem:[#allocation3 + $0x1dc] sm:$0xf]
    %v301 = vld [vmem:[#allocation3 + $0x1e0] sm:$0xf]
    %v302 = vld [vmem:[#allocation3 + $0x1e4] sm:$0xf]
    %v303 = vld [vmem:[#allocation3 + $0x1e8] sm:$0xf]
    %v304 = vld [vmem:[#allocation3 + $0x1ec] sm:$0xf]
    %v305 = vld [vmem:[#allocation3 + $0x1f0] sm:$0xf]
    %v306 = vld [vmem:[#allocation3 + $0x1f4] sm:$0xf]
    %v307 = vld [vmem:[#allocation3 + $0x1f8] sm:$0xf]
    %v308 = vld [vmem:[#allocation3 + $0x1fc] sm:$0xf]
    %v309 = vld [vmem:[#allocation3 + $0x200] sm:$0xf]
    %v310 = vld [vmem:[#allocation3 + $0x204] sm:$0xf]
    %v311 = vld [vmem:[#allocation3 + $0x208] sm:$0xf]
    %v312 = vld [vmem:[#allocation3 + $0x20c] sm:$0xf]
    %v313 = vld [vmem:[#allocation3 + $0x210] sm:$0xf]
    %v314 = vld [vmem:[#allocation3 + $0x214] sm:$0xf]
    %v315 = vld [vmem:[#allocation3 + $0x218] sm:$0xf]
    %v316 = vld [vmem:[#allocation3 + $0x21c] sm:$0xf]
    %v317 = vld [vmem:[#allocation3 + $0x220] sm:$0xf]
    %v318 = vld [vmem:[#allocation3 + $0x224] sm:$0xf]
    %v319 = vld [vmem:[#allocation3 + $0x228] sm:$0xf]
    %v320 = vld [vmem:[#allocation3 + $0x22c] sm:$0xf]
    %v321 = vld [vmem:[#allocation3 + $0x230] sm:$0xf]
    %v322 = vld [vmem:[#allocation3 + $0x234] sm:$0xf]
    %v323 = vld [vmem:[#allocation3 + $0x238] sm:$0xf]
    %v324 = vld [vmem:[#allocation3 + $0x23c] sm:$0xf]
    %v325 = vld [vmem:[#allocation3 + $0x240] sm:$0xf]
    %v326 = vld [vmem:[#allocation3 + $0x244] sm:$0xf]
    %v327 = vld [vmem:[#allocation3 + $0x248] sm:$0xf]
    %v328 = vld [vmem:[#allocation3 + $0x24c] sm:$0xf]
    %v329 = vld [vmem:[#allocation3 + $0x250] sm:$0xf]
    %v330 = vld [vmem:[#allocation3 + $0x254] sm:$0xf]
    %v331 = vld [vmem:[#allocation3 + $0x258] sm:$0xf]
    %v332 = vld [vmem:[#allocation3 + $0x25c] sm:$0xf]
    %v333 = vld [vmem:[#allocation3 + $0x260] sm:$0xf]
    %v334 = vld [vmem:[#allocation3 + $0x264] sm:$0xf]
    %v335 = vld [vmem:[#allocation3 + $0x268] sm:$0xf]
    %v336 = vld [vmem:[#allocation3 + $0x26c] sm:$0xf]
    %v337 = vld [vmem:[#allocation3 + $0x270] sm:$0xf]
    %v338 = vld [vmem:[#allocation3 + $0x274] sm:$0xf]
    %v339 = vld [vmem:[#allocation3 + $0x278] sm:$0xf]
    %v340 = vld [vmem:[#allocation3 + $0x27c] sm:$0xf]
    %v341 = vld [vmem:[#allocation3 + $0x280] sm:$0xf]
    %v342 = vld [vmem:[#allocation3 + $0x284] sm:$0xf]
    %v343 = vld [vmem:[#allocation3 + $0x288] sm:$0xf]
    %v344 = vld [vmem:[#allocation3 + $0x28c] sm:$0xf]
    %v345 = vld [vmem:[#allocation3 + $0x290] sm:$0xf]
    %v346 = vld [vmem:[#allocation3 + $0x294] sm:$0xf]
    %v347 = vld [vmem:[#allocation3 + $0x298] sm:$0xf]
    %v348 = vld [vmem:[#allocation3 + $0x29c] sm:$0xf]
    %v349 = vld [vmem:[#allocation3 + $0x2a0] sm:$0xf]
    %v350 = vld [vmem:[#allocation3 + $0x2a4] sm:$0xf]
    %v351 = vld [vmem:[#allocation3 + $0x2a8] sm:$0xf]
    %v352 = vld [vmem:[#allocation3 + $0x2ac] sm:$0xf]
    %v353 = vld [vmem:[#allocation3 + $0x2b0] sm:$0xf]
    %v354 = vld [vmem:[#allocation3 + $0x2b4] sm:$0xf]
    %v355 = vld [vmem:[#allocation3 + $0x2b8] sm:$0xf]
    %v356 = vld [vmem:[#allocation3 + $0x2bc] sm:$0xf]
    %v357 = vld [vmem:[#allocation3 + $0x2c0] sm:$0xf]
    %v358 = vld [vmem:[#allocation3 + $0x2c4] sm:$0xf]
    %v359 = vld [vmem:[#allocation3 + $0x2c8] sm:$0xf]
    %v360 = vld [vmem:[#allocation3 + $0x2cc] sm:$0xf]
    %v361 = vld [vmem:[#allocation3 + $0x2d0] sm:$0xf]
    %v362 = vld [vmem:[#allocation3 + $0x2d4] sm:$0xf]
    %v363 = vld [vmem:[#allocation3 + $0x2d8] sm:$0xf]
    %v364 = vld [vmem:[#allocation3 + $0x2dc] sm:$0xf]
    %v365 = vld [vmem:[#allocation3 + $0x2e0] sm:$0xf]
    %v366 = vld [vmem:[#allocation3 + $0x2e4] sm:$0xf]
    %v367 = vld [vmem:[#allocation3 + $0x2e8] sm:$0xf]
    %v368 = vld [vmem:[#allocation3 + $0x2ec] sm:$0xf]
    %v369 = vld [vmem:[#allocation3 + $0x2f0] sm:$0xf]
    %v370 = vld [vmem:[#allocation3 + $0x2f4] sm:$0xf]
    %v371 = vld [vmem:[#allocation3 + $0x2f8] sm:$0xf]
    %v372 = vld [vmem:[#allocation3 + $0x2fc] sm:$0xf]
    %v373 = vld [vmem:[#allocation3 + $0x300] sm:$0xf]
    %v374 = vld [vmem:[#allocation3 + $0x304] sm:$0xf]
    %v375 = vld [vmem:[#allocation3 + $0x308] sm:$0xf]
    %v376 = vld [vmem:[#allocation3 + $0x30c] sm:$0xf]
    %v377 = vld [vmem:[#allocation3 + $0x310] sm:$0xf]
    %v378 = vld [vmem:[#allocation3 + $0x314] sm:$0xf]
    %v379 = vld [vmem:[#allocation3 + $0x318] sm:$0xf]
    %v380 = vld [vmem:[#allocation3 + $0x31c] sm:$0xf]
    %v381 = vld [vmem:[#allocation3 + $0x320] sm:$0xf]
    %v382 = vld [vmem:[#allocation3 + $0x324] sm:$0xf]
    %v383 = vld [vmem:[#allocation3 + $0x328] sm:$0xf]
    %v384 = vld [vmem:[#allocation3 + $0x32c] sm:$0xf]
    %v385 = vld [vmem:[#allocation3 + $0x330] sm:$0xf]
    %v386 = vld [vmem:[#allocation3 + $0x334] sm:$0xf]
    %v387 = vld [vmem:[#allocation3 + $0x338] sm:$0xf]
    %v388 = vld [vmem:[#allocation3 + $0x33c] sm:$0xf]
    %v389 = vld [vmem:[#allocation3 + $0x340] sm:$0xf]
    %v390 = vld [vmem:[#allocation3 + $0x344] sm:$0xf]
    %v391 = vld [vmem:[#allocation3 + $0x348] sm:$0xf]
    %v392 = vld [vmem:[#allocation3 + $0x34c] sm:$0xf]
    %v393 = vld [vmem:[#allocation3 + $0x350] sm:$0xf]
    %v394 = vld [vmem:[#allocation3 + $0x354] sm:$0xf]
    %v395 = vld [vmem:[#allocation3 + $0x358] sm:$0xf]
    %v396 = vld [vmem:[#allocation3 + $0x35c] sm:$0xf]
    %v397 = vld [vmem:[#allocation3 + $0x360] sm:$0xf]
    %v398 = vld [vmem:[#allocation3 + $0x364] sm:$0xf]
    %v399 = vld [vmem:[#allocation3 + $0x368] sm:$0xf]
    %v400 = vld [vmem:[#allocation3 + $0x36c] sm:$0xf]
    %v401 = vld [vmem:[#allocation3 + $0x370] sm:$0xf]
    %v402 = vld [vmem:[#allocation3 + $0x374] sm:$0xf]
    %v403 = vld [vmem:[#allocation3 + $0x378] sm:$0xf]
    %v404 = vld [vmem:[#allocation3 + $0x37c] sm:$0xf]
    %v405 = vld [vmem:[#allocation3 + $0x380] sm:$0xf]
    %v406 = vld [vmem:[#allocation3 + $0x384] sm:$0xf]
    %v407 = vld [vmem:[#allocation3 + $0x388] sm:$0xf]
    %v408 = vld [vmem:[#allocation3 + $0x38c] sm:$0xf]
    %v409 = vld [vmem:[#allocation3 + $0x390] sm:$0xf]
    %v410 = vld [vmem:[#allocation3 + $0x394] sm:$0xf]
    %v411 = vld [vmem:[#allocation3 + $0x398] sm:$0xf]
    %v412 = vld [vmem:[#allocation3 + $0x39c] sm:$0xf]
    %v413 = vld [vmem:[#allocation3 + $0x3a0] sm:$0xf]
    %v414 = vld [vmem:[#allocation3 + $0x3a4] sm:$0xf]
    %v415 = vld [vmem:[#allocation3 + $0x3a8] sm:$0xf]
    %v416 = vld [vmem:[#allocation3 + $0x3ac] sm:$0xf]
    %v417 = vld [vmem:[#allocation3 + $0x3b0] sm:$0xf]
    %v418 = vld [vmem:[#allocation3 + $0x3b4] sm:$0xf]
    %v419 = vld [vmem:[#allocation3 + $0x3b8] sm:$0xf]
    %v420 = vld [vmem:[#allocation3 + $0x3bc] sm:$0xf]
    %v421 = vld [vmem:[#allocation3 + $0x3c0] sm:$0xf]
    %v422 = vld [vmem:[#allocation3 + $0x3c4] sm:$0xf]
    %v423 = vld [vmem:[#allocation3 + $0x3c8] sm:$0xf]
    %v424 = vld [vmem:[#allocation3 + $0x3cc] sm:$0xf]
    %v425 = vld [vmem:[#allocation3 + $0x3d0] sm:$0xf]
    %v426 = vld [vmem:[#allocation3 + $0x3d4] sm:$0xf]
    %v427 = vld [vmem:[#allocation3 + $0x3d8] sm:$0xf]
    %v428 = vld [vmem:[#allocation3 + $0x3dc] sm:$0xf]
    %v429 = vld [vmem:[#allocation3 + $0x3e0] sm:$0xf]
    %v430 = vld [vmem:[#allocation3 + $0x3e4] sm:$0xf]
    %v431 = vld [vmem:[#allocation3 + $0x3e8] sm:$0xf]
    %v432 = vld [vmem:[#allocation3 + $0x3ec] sm:$0xf]
    %v433 = vld [vmem:[#allocation3 + $0x3f0] sm:$0xf]
    %v434 = vld [vmem:[#allocation3 + $0x3f4] sm:$0xf]
    %v435 = vld [vmem:[#allocation3 + $0x3f8] sm:$0xf]
    %v436 = vld [vmem:[#allocation3 + $0x3fc] sm:$0xf]
    %v437 = vld [vmem:[#allocation2] sm:$0x1f]
    %v694 = vunpack.c.l.b16 %v181
    %v695 = vunpack.c.l.b16 %v182
    %v696 = vunpack.c.l.b16 %v183
    %v697 = vunpack.c.l.b16 %v184
    %v698 = vunpack.c.l.b16 %v185
    %v699 = vunpack.c.l.b16 %v186
    %v700 = vunpack.c.l.b16 %v187
    %v701 = vunpack.c.l.b16 %v188
    %v702 = vunpack.c.l.b16 %v189
    %v703 = vunpack.c.l.b16 %v190
    %v704 = vunpack.c.l.b16 %v191
    %v705 = vunpack.c.l.b16 %v192
    %v706 = vunpack.c.l.b16 %v193
    %v707 = vunpack.c.l.b16 %v194
    %v708 = vunpack.c.l.b16 %v195
    %v709 = vunpack.c.l.b16 %v196
    %v710 = vunpack.c.l.b16 %v197
    %v711 = vunpack.c.l.b16 %v198
    %v712 = vunpack.c.l.b16 %v199
    %v713 = vunpack.c.l.b16 %v200
    %v714 = vunpack.c.l.b16 %v201
    %v715 = vunpack.c.l.b16 %v202
    %v716 = vunpack.c.l.b16 %v203
    %v717 = vunpack.c.l.b16 %v204
    %v718 = vunpack.c.l.b16 %v205
    %v719 = vunpack.c.l.b16 %v206
    %v720 = vunpack.c.l.b16 %v207
    %v721 = vunpack.c.l.b16 %v208
    %v722 = vunpack.c.l.b16 %v209
    %v723 = vunpack.c.l.b16 %v210
    %v724 = vunpack.c.l.b16 %v211
    %v725 = vunpack.c.l.b16 %v212
    %v726 = vunpack.c.l.b16 %v213
    %v727 = vunpack.c.l.b16 %v214
    %v728 = vunpack.c.l.b16 %v215
    %v729 = vunpack.c.l.b16 %v216
    %v730 = vunpack.c.l.b16 %v217
    %v731 = vunpack.c.l.b16 %v218
    %v732 = vunpack.c.l.b16 %v219
    %v733 = vunpack.c.l.b16 %v220
    %v734 = vunpack.c.l.b16 %v221
    %v735 = vunpack.c.l.b16 %v222
    %v736 = vunpack.c.l.b16 %v223
    %v737 = vunpack.c.l.b16 %v224
    %v738 = vunpack.c.l.b16 %v225
    %v739 = vunpack.c.l.b16 %v226
    %v740 = vunpack.c.l.b16 %v227
    %v741 = vunpack.c.l.b16 %v228
    %v742 = vunpack.c.l.b16 %v229
    %v743 = vunpack.c.l.b16 %v230
    %v744 = vunpack.c.l.b16 %v231
    %v745 = vunpack.c.l.b16 %v232
    %v746 = vunpack.c.l.b16 %v233
    %v747 = vunpack.c.l.b16 %v234
    %v748 = vunpack.c.l.b16 %v235
    %v749 = vunpack.c.l.b16 %v236
    %v750 = vunpack.c.l.b16 %v237
    %v751 = vunpack.c.l.b16 %v238
    %v752 = vunpack.c.l.b16 %v239
    %v753 = vunpack.c.l.b16 %v240
    %v754 = vunpack.c.l.b16 %v241
    %v755 = vunpack.c.l.b16 %v242
    %v756 = vunpack.c.l.b16 %v243
    %v757 = vunpack.c.l.b16 %v244
    %v758 = vunpack.c.l.b16 %v245
    %v759 = vunpack.c.l.b16 %v246
    %v760 = vunpack.c.l.b16 %v247
    %v761 = vunpack.c.l.b16 %v248
    %v762 = vunpack.c.l.b16 %v249
    %v763 = vunpack.c.l.b16 %v250
    %v764 = vunpack.c.l.b16 %v251
    %v765 = vunpack.c.l.b16 %v252
    %v766 = vunpack.c.l.b16 %v253
    %v767 = vunpack.c.l.b16 %v254
    %v768 = vunpack.c.l.b16 %v255
    %v769 = vunpack.c.l.b16 %v256
    %v770 = vunpack.c.l.b16 %v257
    %v771 = vunpack.c.l.b16 %v258
    %v772 = vunpack.c.l.b16 %v259
    %v773 = vunpack.c.l.b16 %v260
    %v774 = vunpack.c.l.b16 %v261
    %v775 = vunpack.c.l.b16 %v262
    %v776 = vunpack.c.l.b16 %v263
    %v777 = vunpack.c.l.b16 %v264
    %v778 = vunpack.c.l.b16 %v265
    %v779 = vunpack.c.l.b16 %v266
    %v780 = vunpack.c.l.b16 %v267
    %v781 = vunpack.c.l.b16 %v268
    %v782 = vunpack.c.l.b16 %v269
    %v783 = vunpack.c.l.b16 %v270
    %v784 = vunpack.c.l.b16 %v271
    %v785 = vunpack.c.l.b16 %v272
    %v786 = vunpack.c.l.b16 %v273
    %v787 = vunpack.c.l.b16 %v274
    %v788 = vunpack.c.l.b16 %v275
    %v789 = vunpack.c.l.b16 %v276
    %v790 = vunpack.c.l.b16 %v277
    %v791 = vunpack.c.l.b16 %v278
    %v792 = vunpack.c.l.b16 %v279
    %v793 = vunpack.c.l.b16 %v280
    %v794 = vunpack.c.l.b16 %v281
    %v795 = vunpack.c.l.b16 %v282
    %v796 = vunpack.c.l.b16 %v283
    %v797 = vunpack.c.l.b16 %v284
    %v798 = vunpack.c.l.b16 %v285
    %v799 = vunpack.c.l.b16 %v286
    %v800 = vunpack.c.l.b16 %v287
    %v801 = vunpack.c.l.b16 %v288
    %v802 = vunpack.c.l.b16 %v289
    %v803 = vunpack.c.l.b16 %v290
    %v804 = vunpack.c.l.b16 %v291
    %v805 = vunpack.c.l.b16 %v292
    %v806 = vunpack.c.l.b16 %v293
    %v807 = vunpack.c.l.b16 %v294
    %v808 = vunpack.c.l.b16 %v295
    %v809 = vunpack.c.l.b16 %v296
    %v810 = vunpack.c.l.b16 %v297
    %v811 = vunpack.c.l.b16 %v298
    %v812 = vunpack.c.l.b16 %v299
    %v813 = vunpack.c.l.b16 %v300
    %v814 = vunpack.c.l.b16 %v301
    %v815 = vunpack.c.l.b16 %v302
    %v816 = vunpack.c.l.b16 %v303
    %v817 = vunpack.c.l.b16 %v304
    %v818 = vunpack.c.l.b16 %v305
    %v819 = vunpack.c.l.b16 %v306
    %v820 = vunpack.c.l.b16 %v307
    %v821 = vunpack.c.l.b16 %v308
    %v822 = vunpack.c.l.b16 %v309
    %v823 = vunpack.c.l.b16 %v310
    %v824 = vunpack.c.l.b16 %v311
    %v825 = vunpack.c.l.b16 %v312
    %v826 = vunpack.c.l.b16 %v313
    %v827 = vunpack.c.l.b16 %v314
    %v828 = vunpack.c.l.b16 %v315
    %v829 = vunpack.c.l.b16 %v316
    %v830 = vunpack.c.l.b16 %v317
    %v831 = vunpack.c.l.b16 %v318
    %v832 = vunpack.c.l.b16 %v319
    %v833 = vunpack.c.l.b16 %v320
    %v834 = vunpack.c.l.b16 %v321
    %v835 = vunpack.c.l.b16 %v322
    %v836 = vunpack.c.l.b16 %v323
    %v837 = vunpack.c.l.b16 %v324
    %v838 = vunpack.c.l.b16 %v325
    %v839 = vunpack.c.l.b16 %v326
    %v840 = vunpack.c.l.b16 %v327
    %v841 = vunpack.c.l.b16 %v328
    %v842 = vunpack.c.l.b16 %v329
    %v843 = vunpack.c.l.b16 %v330
    %v844 = vunpack.c.l.b16 %v331
    %v845 = vunpack.c.l.b16 %v332
    %v846 = vunpack.c.l.b16 %v333
    %v847 = vunpack.c.l.b16 %v334
    %v848 = vunpack.c.l.b16 %v335
    %v849 = vunpack.c.l.b16 %v336
    %v850 = vunpack.c.l.b16 %v337
    %v851 = vunpack.c.l.b16 %v338
    %v852 = vunpack.c.l.b16 %v339
    %v853 = vunpack.c.l.b16 %v340
    %v854 = vunpack.c.l.b16 %v341
    %v855 = vunpack.c.l.b16 %v342
    %v856 = vunpack.c.l.b16 %v343
    %v857 = vunpack.c.l.b16 %v344
    %v858 = vunpack.c.l.b16 %v345
    %v859 = vunpack.c.l.b16 %v346
    %v860 = vunpack.c.l.b16 %v347
    %v861 = vunpack.c.l.b16 %v348
    %v862 = vunpack.c.l.b16 %v349
    %v863 = vunpack.c.l.b16 %v350
    %v864 = vunpack.c.l.b16 %v351
    %v865 = vunpack.c.l.b16 %v352
    %v866 = vunpack.c.l.b16 %v353
    %v867 = vunpack.c.l.b16 %v354
    %v868 = vunpack.c.l.b16 %v355
    %v869 = vunpack.c.l.b16 %v356
    %v870 = vunpack.c.l.b16 %v357
    %v871 = vunpack.c.l.b16 %v358
    %v872 = vunpack.c.l.b16 %v359
    %v873 = vunpack.c.l.b16 %v360
    %v874 = vunpack.c.l.b16 %v361
    %v875 = vunpack.c.l.b16 %v362
    %v876 = vunpack.c.l.b16 %v363
    %v877 = vunpack.c.l.b16 %v364
    %v878 = vunpack.c.l.b16 %v365
    %v879 = vunpack.c.l.b16 %v366
    %v880 = vunpack.c.l.b16 %v367
    %v881 = vunpack.c.l.b16 %v368
    %v882 = vunpack.c.l.b16 %v369
    %v883 = vunpack.c.l.b16 %v370
    %v884 = vunpack.c.l.b16 %v371
    %v885 = vunpack.c.l.b16 %v372
    %v886 = vunpack.c.l.b16 %v373
    %v887 = vunpack.c.l.b16 %v374
    %v888 = vunpack.c.l.b16 %v375
    %v889 = vunpack.c.l.b16 %v376
    %v890 = vunpack.c.l.b16 %v377
    %v891 = vunpack.c.l.b16 %v378
    %v892 = vunpack.c.l.b16 %v379
    %v893 = vunpack.c.l.b16 %v380
    %v894 = vunpack.c.l.b16 %v381
    %v895 = vunpack.c.l.b16 %v382
    %v896 = vunpack.c.l.b16 %v383
    %v897 = vunpack.c.l.b16 %v384
    %v898 = vunpack.c.l.b16 %v385
    %v899 = vunpack.c.l.b16 %v386
    %v900 = vunpack.c.l.b16 %v387
    %v901 = vunpack.c.l.b16 %v388
    %v902 = vunpack.c.l.b16 %v389
    %v903 = vunpack.c.l.b16 %v390
    %v904 = vunpack.c.l.b16 %v391
    %v905 = vunpack.c.l.b16 %v392
    %v906 = vunpack.c.l.b16 %v393
    %v907 = vunpack.c.l.b16 %v394
    %v908 = vunpack.c.l.b16 %v395
    %v909 = vunpack.c.l.b16 %v396
    %v910 = vunpack.c.l.b16 %v397
    %v911 = vunpack.c.l.b16 %v398
    %v912 = vunpack.c.l.b16 %v399
    %v913 = vunpack.c.l.b16 %v400
    %v914 = vunpack.c.l.b16 %v401
    %v915 = vunpack.c.l.b16 %v402
    %v916 = vunpack.c.l.b16 %v403
    %v917 = vunpack.c.l.b16 %v404
    %v918 = vunpack.c.l.b16 %v405
    %v919 = vunpack.c.l.b16 %v406
    %v920 = vunpack.c.l.b16 %v407
    %v921 = vunpack.c.l.b16 %v408
    %v922 = vunpack.c.l.b16 %v409
    %v923 = vunpack.c.l.b16 %v410
    %v924 = vunpack.c.l.b16 %v411
    %v925 = vunpack.c.l.b16 %v412
    %v926 = vunpack.c.l.b16 %v413
    %v927 = vunpack.c.l.b16 %v414
    %v928 = vunpack.c.l.b16 %v415
    %v929 = vunpack.c.l.b16 %v416
    %v930 = vunpack.c.l.b16 %v417
    %v931 = vunpack.c.l.b16 %v418
    %v932 = vunpack.c.l.b16 %v419
    %v933 = vunpack.c.l.b16 %v420
    %v934 = vunpack.c.l.b16 %v421
    %v935 = vunpack.c.l.b16 %v422
    %v936 = vunpack.c.l.b16 %v423
    %v937 = vunpack.c.l.b16 %v424
    %v938 = vunpack.c.l.b16 %v425
    %v939 = vunpack.c.l.b16 %v426
    %v940 = vunpack.c.l.b16 %v427
    %v941 = vunpack.c.l.b16 %v428
    %v942 = vunpack.c.l.b16 %v429
    %v943 = vunpack.c.l.b16 %v430
    %v944 = vunpack.c.l.b16 %v431
    %v945 = vunpack.c.l.b16 %v432
    %v946 = vunpack.c.l.b16 %v433
    %v947 = vunpack.c.l.b16 %v434
    %v948 = vunpack.c.l.b16 %v435
    %v949 = vunpack.c.l.b16 %v436
    %v950 = vpack.c.b16 %v695, %v694
    %v951 = vpack.c.b16 %v697, %v696
    %v952 = vpack.c.b16 %v699, %v698
    %v953 = vpack.c.b16 %v701, %v700
    %v954 = vpack.c.b16 %v703, %v702
    %v955 = vpack.c.b16 %v705, %v704
    %v956 = vpack.c.b16 %v707, %v706
    %v957 = vpack.c.b16 %v709, %v708
    %v958 = vpack.c.b16 %v711, %v710
    %v959 = vpack.c.b16 %v713, %v712
    %v960 = vpack.c.b16 %v715, %v714
    %v961 = vpack.c.b16 %v717, %v716
    %v962 = vpack.c.b16 %v719, %v718
    %v963 = vpack.c.b16 %v721, %v720
    %v964 = vpack.c.b16 %v723, %v722
    %v965 = vpack.c.b16 %v725, %v724
    %v966 = vpack.c.b16 %v727, %v726
    %v967 = vpack.c.b16 %v729, %v728
    %v968 = vpack.c.b16 %v731, %v730
    %v969 = vpack.c.b16 %v733, %v732
    %v970 = vpack.c.b16 %v735, %v734
    %v971 = vpack.c.b16 %v737, %v736
    %v972 = vpack.c.b16 %v739, %v738
    %v973 = vpack.c.b16 %v741, %v740
    %v974 = vpack.c.b16 %v743, %v742
    %v975 = vpack.c.b16 %v745, %v744
    %v976 = vpack.c.b16 %v747, %v746
    %v977 = vpack.c.b16 %v749, %v748
    %v978 = vpack.c.b16 %v751, %v750
    %v979 = vpack.c.b16 %v753, %v752
    %v980 = vpack.c.b16 %v755, %v754
    %v981 = vpack.c.b16 %v757, %v756
    %v982 = vpack.c.b16 %v759, %v758
    %v983 = vpack.c.b16 %v761, %v760
    %v984 = vpack.c.b16 %v763, %v762
    %v985 = vpack.c.b16 %v765, %v764
    %v986 = vpack.c.b16 %v767, %v766
    %v987 = vpack.c.b16 %v769, %v768
    %v988 = vpack.c.b16 %v771, %v770
    %v989 = vpack.c.b16 %v773, %v772
    %v990 = vpack.c.b16 %v775, %v774
    %v991 = vpack.c.b16 %v777, %v776
    %v992 = vpack.c.b16 %v779, %v778
    %v993 = vpack.c.b16 %v781, %v780
    %v994 = vpack.c.b16 %v783, %v782
    %v995 = vpack.c.b16 %v785, %v784
    %v996 = vpack.c.b16 %v787, %v786
    %v997 = vpack.c.b16 %v789, %v788
    %v998 = vpack.c.b16 %v791, %v790
    %v999 = vpack.c.b16 %v793, %v792
    %v1000 = vpack.c.b16 %v795, %v794
    %v1001 = vpack.c.b16 %v797, %v796
    %v1002 = vpack.c.b16 %v799, %v798
    %v1003 = vpack.c.b16 %v801, %v800
    %v1004 = vpack.c.b16 %v803, %v802
    %v1005 = vpack.c.b16 %v805, %v804
    %v1006 = vpack.c.b16 %v807, %v806
    %v1007 = vpack.c.b16 %v809, %v808
    %v1008 = vpack.c.b16 %v811, %v810
    %v1009 = vpack.c.b16 %v813, %v812
    %v1010 = vpack.c.b16 %v815, %v814
    %v1011 = vpack.c.b16 %v817, %v816
    %v1012 = vpack.c.b16 %v819, %v818
    %v1013 = vpack.c.b16 %v821, %v820
    %v1014 = vpack.c.b16 %v823, %v822
    %v1015 = vpack.c.b16 %v825, %v824
    %v1016 = vpack.c.b16 %v827, %v826
    %v1017 = vpack.c.b16 %v829, %v828
    %v1018 = vpack.c.b16 %v831, %v830
    %v1019 = vpack.c.b16 %v833, %v832
    %v1020 = vpack.c.b16 %v835, %v834
    %v1021 = vpack.c.b16 %v837, %v836
    %v1022 = vpack.c.b16 %v839, %v838
    %v1023 = vpack.c.b16 %v841, %v840
    %v1024 = vpack.c.b16 %v843, %v842
    %v1025 = vpack.c.b16 %v845, %v844
    %v1026 = vpack.c.b16 %v847, %v846
    %v1027 = vpack.c.b16 %v849, %v848
    %v1028 = vpack.c.b16 %v851, %v850
    %v1029 = vpack.c.b16 %v853, %v852
    %v1030 = vpack.c.b16 %v855, %v854
    %v1031 = vpack.c.b16 %v857, %v856
    %v1032 = vpack.c.b16 %v859, %v858
    %v1033 = vpack.c.b16 %v861, %v860
    %v1034 = vpack.c.b16 %v863, %v862
    %v1035 = vpack.c.b16 %v865, %v864
    %v1036 = vpack.c.b16 %v867, %v866
    %v1037 = vpack.c.b16 %v869, %v868
    %v1038 = vpack.c.b16 %v871, %v870
    %v1039 = vpack.c.b16 %v873, %v872
    %v1040 = vpack.c.b16 %v875, %v874
    %v1041 = vpack.c.b16 %v877, %v876
    %v1042 = vpack.c.b16 %v879, %v878
    %v1043 = vpack.c.b16 %v881, %v880
    %v1044 = vpack.c.b16 %v883, %v882
    %v1045 = vpack.c.b16 %v885, %v884
    %v1046 = vpack.c.b16 %v887, %v886
    %v1047 = vpack.c.b16 %v889, %v888
    %v1048 = vpack.c.b16 %v891, %v890
    %v1049 = vpack.c.b16 %v893, %v892
    %v1050 = vpack.c.b16 %v895, %v894
    %v1051 = vpack.c.b16 %v897, %v896
    %v1052 = vpack.c.b16 %v899, %v898
    %v1053 = vpack.c.b16 %v901, %v900
    %v1054 = vpack.c.b16 %v903, %v902
    %v1055 = vpack.c.b16 %v905, %v904
    %v1056 = vpack.c.b16 %v907, %v906
    %v1057 = vpack.c.b16 %v909, %v908
    %v1058 = vpack.c.b16 %v911, %v910
    %v1059 = vpack.c.b16 %v913, %v912
    %v1060 = vpack.c.b16 %v915, %v914
    %v1061 = vpack.c.b16 %v917, %v916
    %v1062 = vpack.c.b16 %v919, %v918
    %v1063 = vpack.c.b16 %v921, %v920
    %v1064 = vpack.c.b16 %v923, %v922
    %v1065 = vpack.c.b16 %v925, %v924
    %v1066 = vpack.c.b16 %v927, %v926
    %v1067 = vpack.c.b16 %v929, %v928
    %v1068 = vpack.c.b16 %v931, %v930
    %v1069 = vpack.c.b16 %v933, %v932
    %v1070 = vpack.c.b16 %v935, %v934
    %v1071 = vpack.c.b16 %v937, %v936
    %v1072 = vpack.c.b16 %v939, %v938
    %v1073 = vpack.c.b16 %v941, %v940
    %v1074 = vpack.c.b16 %v943, %v942
    %v1075 = vpack.c.b16 %v945, %v944
    %v1076 = vpack.c.b16 %v947, %v946
    %v1077 = vpack.c.b16 %v949, %v948
    %1206 = vmatpush.bf16.msra.mxu0 %v957
    %1207 = vmatpush.bf16.msra.mxu0 %v956
    %1208 = vmatpush.bf16.msra.mxu0 %v955
    %1209 = vmatpush.bf16.msra.mxu0 %v954
    %1210 = vmatpush.bf16.msra.mxu0 %v953
    %1211 = vmatpush.bf16.msra.mxu0 %v952
    %1212 = vmatpush.bf16.msra.mxu0 %v951
    %1213 = vmatpush.bf16.msra.mxu0 %v950
    %1214 = vmatmul.bf16.gmra.mxu0 %v165
    %v1215 = vpop.f32.mrf.mxu0
    %v1216 = vadd.f32 0.0, %v1215
    %v1217 = vpop.f32.mrf.mxu0
    %1218 = vdwg.mxu0
    %1219 = vmatpush.bf16.msra.mxu0 %v965
    %1220 = vmatpush.bf16.msra.mxu0 %v964
    %1221 = vmatpush.bf16.msra.mxu0 %v963
    %1222 = vmatpush.bf16.msra.mxu0 %v962
    %1223 = vmatpush.bf16.msra.mxu0 %v961
    %1224 = vmatpush.bf16.msra.mxu0 %v960
    %1225 = vmatpush.bf16.msra.mxu0 %v959
    %1226 = vmatpush.bf16.msra.mxu0 %v958
    %1227 = vmatmul.bf16.gmra.mxu0 %v166
    %v1228 = vpop.f32.mrf.mxu0
    %v1229 = vadd.f32 %v1216, %v1228
    %v1230 = vpop.f32.mrf.mxu0
    %1231 = vdwg.mxu0
    %1232 = vmatpush.bf16.msra.mxu0 %v973
    %1233 = vmatpush.bf16.msra.mxu0 %v972
    %1234 = vmatpush.bf16.msra.mxu0 %v971
    %1235 = vmatpush.bf16.msra.mxu0 %v970
    %1236 = vmatpush.bf16.msra.mxu0 %v969
    %1237 = vmatpush.bf16.msra.mxu0 %v968
    %1238 = vmatpush.bf16.msra.mxu0 %v967
    %1239 = vmatpush.bf16.msra.mxu0 %v966
    %1240 = vmatmul.bf16.gmra.mxu0 %v167
    %v1241 = vpop.f32.mrf.mxu0
    %v1242 = vadd.f32 %v1229, %v1241
    %v1243 = vpop.f32.mrf.mxu0
    %1244 = vdwg.mxu0
    %1245 = vmatpush.bf16.msra.mxu0 %v981
    %1246 = vmatpush.bf16.msra.mxu0 %v980
    %1247 = vmatpush.bf16.msra.mxu0 %v979
    %1248 = vmatpush.bf16.msra.mxu0 %v978
    %1249 = vmatpush.bf16.msra.mxu0 %v977
    %1250 = vmatpush.bf16.msra.mxu0 %v976
    %1251 = vmatpush.bf16.msra.mxu0 %v975
    %1252 = vmatpush.bf16.msra.mxu0 %v974
    %1253 = vmatmul.bf16.gmra.mxu0 %v168
    %v1254 = vpop.f32.mrf.mxu0
    %v1255 = vadd.f32 %v1242, %v1254
    %v1256 = vpop.f32.mrf.mxu0
    %1257 = vdwg.mxu0
    %1258 = vmatpush.bf16.msra.mxu0 %v989
    %1259 = vmatpush.bf16.msra.mxu0 %v988
    %1260 = vmatpush.bf16.msra.mxu0 %v987
    %1261 = vmatpush.bf16.msra.mxu0 %v986
    %1262 = vmatpush.bf16.msra.mxu0 %v985
    %1263 = vmatpush.bf16.msra.mxu0 %v984
    %1264 = vmatpush.bf16.msra.mxu0 %v983
    %1265 = vmatpush.bf16.msra.mxu0 %v982
    %1266 = vmatmul.bf16.gmra.mxu0 %v169
    %v1267 = vpop.f32.mrf.mxu0
    %v1268 = vadd.f32 %v1255, %v1267
    %v1269 = vpop.f32.mrf.mxu0
    %1270 = vdwg.mxu0
    %1271 = vmatpush.bf16.msra.mxu0 %v997
    %1272 = vmatpush.bf16.msra.mxu0 %v996
    %1273 = vmatpush.bf16.msra.mxu0 %v995
    %1274 = vmatpush.bf16.msra.mxu0 %v994
    %1275 = vmatpush.bf16.msra.mxu0 %v993
    %1276 = vmatpush.bf16.msra.mxu0 %v992
    %1277 = vmatpush.bf16.msra.mxu0 %v991
    %1278 = vmatpush.bf16.msra.mxu0 %v990
    %1279 = vmatmul.bf16.gmra.mxu0 %v170
    %v1280 = vpop.f32.mrf.mxu0
    %v1281 = vadd.f32 %v1268, %v1280
    %v1282 = vpop.f32.mrf.mxu0
    %1283 = vdwg.mxu0
    %1284 = vmatpush.bf16.msra.mxu0 %v1005
    %1285 = vmatpush.bf16.msra.mxu0 %v1004
    %1286 = vmatpush.bf16.msra.mxu0 %v1003
    %1287 = vmatpush.bf16.msra.mxu0 %v1002
    %1288 = vmatpush.bf16.msra.mxu0 %v1001
    %1289 = vmatpush.bf16.msra.mxu0 %v1000
    %1290 = vmatpush.bf16.msra.mxu0 %v999
    %1291 = vmatpush.bf16.msra.mxu0 %v998
    %1292 = vmatmul.bf16.gmra.mxu0 %v171
    %v1293 = vpop.f32.mrf.mxu0
    %v1294 = vadd.f32 %v1281, %v1293
    %v1295 = vpop.f32.mrf.mxu0
    %1296 = vdwg.mxu0
    %1297 = vmatpush.bf16.msra.mxu0 %v1013
    %1298 = vmatpush.bf16.msra.mxu0 %v1012
    %1299 = vmatpush.bf16.msra.mxu0 %v1011
    %1300 = vmatpush.bf16.msra.mxu0 %v1010
    %1301 = vmatpush.bf16.msra.mxu0 %v1009
    %1302 = vmatpush.bf16.msra.mxu0 %v1008
    %1303 = vmatpush.bf16.msra.mxu0 %v1007
    %1304 = vmatpush.bf16.msra.mxu0 %v1006
    %1305 = vmatmul.bf16.gmra.mxu0 %v172
    %v1306 = vpop.f32.mrf.mxu0
    %v1307 = vadd.f32 %v1294, %v1306
    %v1308 = vpop.f32.mrf.mxu0
    %1309 = vdwg.mxu0
    %1310 = vmatpush.bf16.msra.mxu0 %v1021
    %1311 = vmatpush.bf16.msra.mxu0 %v1020
    %1312 = vmatpush.bf16.msra.mxu0 %v1019
    %1313 = vmatpush.bf16.msra.mxu0 %v1018
    %1314 = vmatpush.bf16.msra.mxu0 %v1017
    %1315 = vmatpush.bf16.msra.mxu0 %v1016
    %1316 = vmatpush.bf16.msra.mxu0 %v1015
    %1317 = vmatpush.bf16.msra.mxu0 %v1014
    %1318 = vmatmul.bf16.gmra.mxu0 %v173
    %v1319 = vpop.f32.mrf.mxu0
    %v1320 = vadd.f32 %v1307, %v1319
    %v1321 = vpop.f32.mrf.mxu0
    %1322 = vdwg.mxu0
    %1323 = vmatpush.bf16.msra.mxu0 %v1029
    %1324 = vmatpush.bf16.msra.mxu0 %v1028
    %1325 = vmatpush.bf16.msra.mxu0 %v1027
    %1326 = vmatpush.bf16.msra.mxu0 %v1026
    %1327 = vmatpush.bf16.msra.mxu0 %v1025
    %1328 = vmatpush.bf16.msra.mxu0 %v1024
    %1329 = vmatpush.bf16.msra.mxu0 %v1023
    %1330 = vmatpush.bf16.msra.mxu0 %v1022
    %1331 = vmatmul.bf16.gmra.mxu0 %v174
    %v1332 = vpop.f32.mrf.mxu0
    %v1333 = vadd.f32 %v1320, %v1332
    %v1334 = vpop.f32.mrf.mxu0
    %1335 = vdwg.mxu0
    %1336 = vmatpush.bf16.msra.mxu0 %v1037
    %1337 = vmatpush.bf16.msra.mxu0 %v1036
    %1338 = vmatpush.bf16.msra.mxu0 %v1035
    %1339 = vmatpush.bf16.msra.mxu0 %v1034
    %1340 = vmatpush.bf16.msra.mxu0 %v1033
    %1341 = vmatpush.bf16.msra.mxu0 %v1032
    %1342 = vmatpush.bf16.msra.mxu0 %v1031
    %1343 = vmatpush.bf16.msra.mxu0 %v1030
    %1344 = vmatmul.bf16.gmra.mxu0 %v175
    %v1345 = vpop.f32.mrf.mxu0
    %v1346 = vadd.f32 %v1333, %v1345
    %v1347 = vpop.f32.mrf.mxu0
    %1348 = vdwg.mxu0
    %1349 = vmatpush.bf16.msra.mxu0 %v1045
    %1350 = vmatpush.bf16.msra.mxu0 %v1044
    %1351 = vmatpush.bf16.msra.mxu0 %v1043
    %1352 = vmatpush.bf16.msra.mxu0 %v1042
    %1353 = vmatpush.bf16.msra.mxu0 %v1041
    %1354 = vmatpush.bf16.msra.mxu0 %v1040
    %1355 = vmatpush.bf16.msra.mxu0 %v1039
    %1356 = vmatpush.bf16.msra.mxu0 %v1038
    %1357 = vmatmul.bf16.gmra.mxu0 %v176
    %v1358 = vpop.f32.mrf.mxu0
    %v1359 = vadd.f32 %v1346, %v1358
    %v1360 = vpop.f32.mrf.mxu0
    %1361 = vdwg.mxu0
    %1362 = vmatpush.bf16.msra.mxu0 %v1053
    %1363 = vmatpush.bf16.msra.mxu0 %v1052
    %1364 = vmatpush.bf16.msra.mxu0 %v1051
    %1365 = vmatpush.bf16.msra.mxu0 %v1050
    %1366 = vmatpush.bf16.msra.mxu0 %v1049
    %1367 = vmatpush.bf16.msra.mxu0 %v1048
    %1368 = vmatpush.bf16.msra.mxu0 %v1047
    %1369 = vmatpush.bf16.msra.mxu0 %v1046
    %1370 = vmatmul.bf16.gmra.mxu0 %v177
    %v1371 = vpop.f32.mrf.mxu0
    %v1372 = vadd.f32 %v1359, %v1371
    %v1373 = vpop.f32.mrf.mxu0
    %1374 = vdwg.mxu0
    %1375 = vmatpush.bf16.msra.mxu0 %v1061
    %1376 = vmatpush.bf16.msra.mxu0 %v1060
    %1377 = vmatpush.bf16.msra.mxu0 %v1059
    %1378 = vmatpush.bf16.msra.mxu0 %v1058
    %1379 = vmatpush.bf16.msra.mxu0 %v1057
    %1380 = vmatpush.bf16.msra.mxu0 %v1056
    %1381 = vmatpush.bf16.msra.mxu0 %v1055
    %1382 = vmatpush.bf16.msra.mxu0 %v1054
    %1383 = vmatmul.bf16.gmra.mxu0 %v178
    %v1384 = vpop.f32.mrf.mxu0
    %v1385 = vadd.f32 %v1372, %v1384
    %v1386 = vpop.f32.mrf.mxu0
    %1387 = vdwg.mxu0
    %1388 = vmatpush.bf16.msra.mxu0 %v1069
    %1389 = vmatpush.bf16.msra.mxu0 %v1068
    %1390 = vmatpush.bf16.msra.mxu0 %v1067
    %1391 = vmatpush.bf16.msra.mxu0 %v1066
    %1392 = vmatpush.bf16.msra.mxu0 %v1065
    %1393 = vmatpush.bf16.msra.mxu0 %v1064
    %1394 = vmatpush.bf16.msra.mxu0 %v1063
    %1395 = vmatpush.bf16.msra.mxu0 %v1062
    %1396 = vmatmul.bf16.gmra.mxu0 %v179
    %v1397 = vpop.f32.mrf.mxu0
    %v1398 = vadd.f32 %v1385, %v1397
    %v1399 = vpop.f32.mrf.mxu0
    %1400 = vdwg.mxu0
    %1401 = vmatpush.bf16.msra.mxu0 %v1077
    %1402 = vmatpush.bf16.msra.mxu0 %v1076
    %1403 = vmatpush.bf16.msra.mxu0 %v1075
    %1404 = vmatpush.bf16.msra.mxu0 %v1074
    %1405 = vmatpush.bf16.msra.mxu0 %v1073
    %1406 = vmatpush.bf16.msra.mxu0 %v1072
    %1407 = vmatpush.bf16.msra.mxu0 %v1071
    %1408 = vmatpush.bf16.msra.mxu0 %v1070
    %1409 = vmatmul.bf16.gmra.mxu0 %v180
    %v1410 = vpop.f32.mrf.mxu0
    %v1411 = vadd.f32 %v1398, %v1410
    %v1412 = vpop.f32.mrf.mxu0
    %1413 = vdwg.mxu0
    %v1414 = vadd.f32 %v437, %v1411
    %1415 = vst [vmem:[#allocation2] sm:$0x1f] %v1414
    // Predicated region
    $region22: #{tpu_custom_call.1} parent=1 // pred_check
      %p1416 = pneg %p36
    $region23: #{tpu_custom_call.1} parent=1 // pred_check_branch
      %1418 = sbr.rel (%p1416) target = $region25
    $region24: #{tpu_custom_call.1} parent=1 // pred_region
      %v1419 = vld [vmem:[#allocation2] sm:$0x1f]
      %1420 = vst [vmem:[%s3] sm:$0x1f] %v1419
    $region25: #{tpu_custom_call.1} parent=1 // pred_fallthru
      _
    // Predicated region
    $region26: #{tpu_custom_call.1} parent=1 // pred_check
      _
    $region27: #{tpu_custom_call.1} parent=1 // pred_check_branch
      %1422 = sbr.rel (0) target = $region29
    $region28: #{tpu_custom_call.1} parent=1 // pred_region
      _
    $region29: #{tpu_custom_call.1} parent=1 // pred_fallthru
      _
    // Predicated region
    $region30: #{tpu_custom_call.1} parent=1 // pred_check
      _
    $region31: #{tpu_custom_call.1} parent=1 // pred_check_branch
      %1424 = sbr.rel (0) target = $region33
    $region32: #{tpu_custom_call.1} parent=1 // pred_region
      _
    $region33: #{tpu_custom_call.1} parent=1 // pred_fallthru
      _
    %1425 = vsyncpa [#allocation4], 1

</llo_original>
